<compile_context>
chip_gen: v5e
topology: v5e:2x2
jax: 0.10.0
libtpu: 0.0.40
codegen_flags: <defaults>
</compile_context>

<pallas_src>
import jax
import jax.numpy as jnp
import numpy as np
from jax import lax
from jax.experimental import pallas as pl
from jax.experimental.pallas import tpu as pltpu

EPS = 1e-12  # matches softmax_mask epsilon


def _aoa_kernel(tlen_ref, slen_ref, tgt_ref, src_ref, beta_ref, alpha_ref):
    Bb, LS, H = tgt_ref.shape
    L = src_ref.shape[1]

    tgt = tgt_ref[...]            # (Bb, LS, H) native dtype -> MXU
    src = src_ref[...]            # (Bb, L,  H)
    tlen = tlen_ref[...]          # (Bb, 1, 1) int32
    slen = slen_ref[...]          # (Bb, 1, 1) int32

    # M[b, ls, l] = sum_h tgt[b, ls, h] * src[b, l, h]   (no transpose op)
    M = lax.dot_general(
        tgt, src,
        dimension_numbers=(((2,), (2,)), ((0,), (0,))),
        preferred_element_type=jnp.float32)                       # (Bb, LS, L)

    # Padding mask rebuilt in-kernel from iota (no mask tensors in HBM).
    valid = ((lax.broadcasted_iota(jnp.int32, (Bb, LS, L), 1) < tlen)
             & (lax.broadcasted_iota(jnp.int32, (Bb, LS, L), 2) < slen))

    # Per-axis maxima over the *unmasked* M (matches reference semantics).
    c = jnp.max(M, axis=1, keepdims=True)                         # (Bb, 1,  L)
    r = jnp.max(M, axis=2, keepdims=True)                         # (Bb, LS, 1)
    g = jnp.max(r, axis=1, keepdims=True)                         # (Bb, 1,  1)

    # One full-tile exp (EUP) instead of two.
    E = jnp.where(valid, jnp.exp(M - g), 0.0)                     # (Bb, LS, L)

    colsum = jnp.sum(E, axis=1, keepdims=True)                    # (Bb, 1,  L)
    rowsum = jnp.sum(E, axis=2, keepdims=True)                    # (Bb, LS, 1)

    tlen_f = tlen.astype(jnp.float32)
    slen_f = slen.astype(jnp.float32)

    # Exact EPS rescaling (EPS*exp(shift-g)) + the /len averaging folded into
    # one small reciprocal per row / column (no full-tile divide).
    inv_row = 1.0 / ((rowsum + EPS * jnp.exp(r - g)) * tlen_f)    # (Bb, LS, 1)
    inv_col = 1.0 / ((colsum + EPS * jnp.exp(c - g)) * slen_f)    # (Bb, 1,  L)

    # average_beta[b, l]   = sum_ls beta [b, ls, l] / target_len[b]
    # average_alpha[b, ls] = sum_l  alpha[b, ls, l] / source_len[b]
    beta_ref[...] = jnp.sum(E * inv_row, axis=1, keepdims=True).astype(beta_ref.dtype)
    alpha_ref[...] = jnp.sum(E * inv_col, axis=2, keepdims=True).astype(alpha_ref.dtype)


def _pick_batch_block(B, LS, L, H, itemsize, max_block=8, budget=24 << 20):
    # Per-batch resident bytes: double-buffered input tiles + f32 intermediates.
    per_batch = 2 * (LS + L) * H * itemsize + 8 * LS * L * 4 + 64
    return int(max(1, min(B, max_block, budget // max(per_batch, 1))))


def _vmem_limit_bytes(Bb, LS, L, H, itemsize):
    io = 2 * Bb * ((LS + L) * H * itemsize + (L + LS + 2) * 4)
    intermediates = 8 * Bb * LS * L * 4
    # 2x headroom, floor 8 MiB, cap 48 MiB (safe below v7x's 64 MiB VMEM).
    return int(min(max(2 * (io + intermediates), 8 << 20), 48 << 20))


def aoa_forward(source_input, source_lengths, target_input, target_lengths):
    """Pallas implementation of AoA.forward.

    Returns (squeeze_beta (B, L, H), squeeze_alpha (B, LS, H)).
    """
    B, L, H = source_input.shape
    LS = target_input.shape[1]
    itemsize = jnp.dtype(source_input.dtype).itemsize

    Bb = _pick_batch_block(B, LS, L, H, itemsize)
    grid = (pl.cdiv(B, Bb),)

    tlen = target_lengths.reshape(B, 1, 1).astype(jnp.int32)
    slen = source_lengths.reshape(B, 1, 1).astype(jnp.int32)

    cost = pl.CostEstimate(
        flops=2 * B * LS * L * H + 10 * B * LS * L,
        transcendentals=B * (LS * L + LS + L),
        bytes_accessed=(B * LS * H + B * L * H) * itemsize
                       + 2 * B * 4
                       + (B * L + B * LS) * itemsize,
    )

    avg_beta, avg_alpha = pl.pallas_call(
        _aoa_kernel,
        out_shape=(
            jax.ShapeDtypeStruct((B, 1, L), source_input.dtype),   # reduced beta
            jax.ShapeDtypeStruct((B, LS, 1), target_input.dtype),  # reduced alpha
        ),
        grid=grid,
        in_specs=[
            pl.BlockSpec((Bb, 1, 1), lambda b: (b, 0, 0)),   # target_lengths
            pl.BlockSpec((Bb, 1, 1), lambda b: (b, 0, 0)),   # source_lengths
            pl.BlockSpec((Bb, LS, H), lambda b: (b, 0, 0)),  # target_input
            pl.BlockSpec((Bb, L, H), lambda b: (b, 0, 0)),   # source_input
        ],
        out_specs=(
            pl.BlockSpec((Bb, 1, L), lambda b: (b, 0, 0)),   # avg_beta
            pl.BlockSpec((Bb, LS, 1), lambda b: (b, 0, 0)),  # avg_alpha
        ),
        compiler_params=pltpu.CompilerParams(
            dimension_semantics=("parallel",),
            vmem_limit_bytes=_vmem_limit_bytes(Bb, LS, L, H, itemsize),
        ),
        cost_estimate=cost,
    )(tlen, slen, target_input, source_input)

    # Both outputs are constant along H: broadcast outside the kernel so the
    # kernel's HBM writeback stays reduced.
    squeeze_beta = jnp.broadcast_to(avg_beta[:, 0, :, None], (B, L, H))
    squeeze_alpha = jnp.broadcast_to(avg_alpha, (B, LS, H))
    return squeeze_beta, squeeze_alpha


def aoa_reference(source_input, source_lengths, target_input, target_lengths):
    """Pure-JAX reference mirroring the PyTorch semantics exactly."""
    B, L, H = source_input.shape
    LS = target_input.shape[1]
    smask = (jnp.arange(L)[None, :] < source_lengths[:, None]).astype(jnp.float32)
    tmask = (jnp.arange(LS)[None, :] < target_lengths[:, None]).astype(jnp.float32)
    M = jnp.einsum('bsh,blh->bsl', target_input, source_input)
    Mmask = tmask[:, :, None] * smask[:, None, :]

    def softmax_mask(x, m, axis):
        shift = jnp.max(x, axis=axis, keepdims=True)
        e = jnp.exp(x - shift) * m
        n = jnp.sum(e, axis=axis, keepdims=True)
        return e / (n + EPS)

    alpha = softmax_mask(M, Mmask, 1)
    beta = softmax_mask(M, Mmask, 2)
    avg_beta = jnp.sum(beta, axis=1) / target_lengths[:, None].astype(jnp.float32)
    avg_alpha = jnp.sum(alpha, axis=2) / source_lengths[:, None].astype(jnp.float32)
    squeeze_beta = jnp.broadcast_to(avg_beta[:, :, None], (B, L, H))
    squeeze_alpha = jnp.broadcast_to(avg_alpha[:, :, None], (B, LS, H))
    return squeeze_beta, squeeze_alpha


if __name__ == "__main__":
    key = jax.random.PRNGKey(0)
    B, L, LS, H = 2, 16, 8, 32
    k1, k2 = jax.random.split(key)
    source_input = jax.random.normal(k1, (B, L, H), jnp.float32)
    target_input = jax.random.normal(k2, (B, LS, H), jnp.float32)
    # max length must equal the padded seq length (create_mask width = max(seq_lens))
    source_lengths = jnp.array([L, 11], jnp.int32)
    target_lengths = jnp.array([LS, 5], jnp.int32)

    out_beta, out_alpha = aoa_forward(source_input, source_lengths,
                                      target_input, target_lengths)
    jax.block_until_ready((out_beta, out_alpha))

    ref_beta, ref_alpha = aoa_reference(source_input, source_lengths,
                                        target_input, target_lengths)
    assert out_beta.shape == (B, L, H) and out_alpha.shape == (B, LS, H)
    assert np.allclose(np.asarray(out_beta), np.asarray(ref_beta), rtol=1e-5, atol=1e-5)
    assert np.allclose(np.asarray(out_alpha), np.asarray(ref_alpha), rtol=1e-5, atol=1e-5)
    print("KERNEL_OK")
</pallas_src>

<mosaic_0001>
module attributes {stable_mosaic.version = 11 : i64} {
  func.func @_aoa_kernel(%arg0: i32, %arg1: memref<2x1x1xi32, #tpu.memory_space<vmem>>, %arg2: memref<2x1x1xi32, #tpu.memory_space<vmem>>, %arg3: memref<2x8x32xf32, #tpu.memory_space<vmem>>, %arg4: memref<2x16x32xf32, #tpu.memory_space<vmem>>, %arg5: memref<2x1x16xf32, #tpu.memory_space<vmem>>, %arg6: memref<2x8x1xf32, #tpu.memory_space<vmem>>) attributes {dimension_semantics = [#tpu.dimension_semantics<parallel>], iteration_bounds = array<i64: 1>, scalar_prefetch = 0 : i64, scratch_operands = 0 : i64, tpu.core_type = #tpu.core_type<tc>, window_params = [{transform_indices = @transform_0, window_bounds = array<i64: 2, 1, 1>}, {transform_indices = @transform_1, window_bounds = array<i64: 2, 1, 1>}, {transform_indices = @transform_2, window_bounds = array<i64: 2, 8, 32>}, {transform_indices = @transform_3, window_bounds = array<i64: 2, 16, 32>}, {transform_indices = @transform_4, window_bounds = array<i64: 2, 1, 16>}, {transform_indices = @transform_5, window_bounds = array<i64: 2, 8, 1>}]} {
    %c0 = arith.constant 0 : index
    %c0_0 = arith.constant 0 : index
    %c0_1 = arith.constant 0 : index
    %0 = vector.load %arg3[%c0, %c0_0, %c0_1] : memref<2x8x32xf32, #tpu.memory_space<vmem>>, vector<2x8x32xf32>
    %c0_2 = arith.constant 0 : index
    %c0_3 = arith.constant 0 : index
    %c0_4 = arith.constant 0 : index
    %1 = vector.load %arg4[%c0_2, %c0_3, %c0_4] : memref<2x16x32xf32, #tpu.memory_space<vmem>>, vector<2x16x32xf32>
    %c0_5 = arith.constant 0 : index
    %c0_6 = arith.constant 0 : index
    %c0_7 = arith.constant 0 : index
    %2 = vector.load %arg1[%c0_5, %c0_6, %c0_7] : memref<2x1x1xi32, #tpu.memory_space<vmem>>, vector<2x1x1xi32>
    %c0_8 = arith.constant 0 : index
    %c0_9 = arith.constant 0 : index
    %c0_10 = arith.constant 0 : index
    %3 = vector.load %arg2[%c0_8, %c0_9, %c0_10] : memref<2x1x1xi32, #tpu.memory_space<vmem>>, vector<2x1x1xi32>
    %cst = arith.constant dense<0.000000e+00> : vector<2x8x16xf32>
    %4 = tpu.matmul %0, %1, %cst {dimension_numbers = #tpu.dot_dimension_numbers<[2], [2], [1], [1], [0, 0, 0, 1, 1, 1], [0], [0]>} : vector<2x8x32xf32>, vector<2x16x32xf32>, vector<2x8x16xf32> -> vector<2x8x16xf32>
    %5 = tpu.iota {dimensions = array<i32: 1>} : vector<2x8x16xi32>
    %6 = vector.broadcast %2 : vector<2x1x1xi32> to vector<2x8x16xi32>
    %7 = arith.cmpi slt, %5, %6 : vector<2x8x16xi32>
    %8 = tpu.iota {dimensions = array<i32: 2>} : vector<2x8x16xi32>
    %9 = vector.broadcast %3 : vector<2x1x1xi32> to vector<2x8x16xi32>
    %10 = arith.cmpi slt, %8, %9 : vector<2x8x16xi32>
    %11 = arith.andi %7, %10 : vector<2x8x16xi1>
    %cst_11 = arith.constant dense<0xFF800000> : vector<2x16xf32>
    %12 = vector.multi_reduction <maximumf>, %4, %cst_11 [1] : vector<2x8x16xf32> to vector<2x16xf32>
    %13 = vector.shape_cast %12 : vector<2x16xf32> to vector<2x1x16xf32>
    %cst_12 = arith.constant dense<0xFF800000> : vector<2x8xf32>
    %14 = vector.multi_reduction <maximumf>, %4, %cst_12 [2] : vector<2x8x16xf32> to vector<2x8xf32>
    %15 = vector.shape_cast %14 : vector<2x8xf32> to vector<2x8x1xf32>
    %cst_13 = arith.constant dense<0xFF800000> : vector<2x1xf32>
    %16 = vector.multi_reduction <maximumf>, %15, %cst_13 [1] : vector<2x8x1xf32> to vector<2x1xf32>
    %17 = vector.shape_cast %16 : vector<2x1xf32> to vector<2x1x1xf32>
    %18 = vector.broadcast %17 : vector<2x1x1xf32> to vector<2x8x16xf32>
    %19 = arith.subf %4, %18 : vector<2x8x16xf32>
    %20 = math.exp %19 : vector<2x8x16xf32>
    %cst_14 = arith.constant 0.000000e+00 : f32
    %21 = vector.broadcast %cst_14 : f32 to vector<2x8x16xf32>
    %22 = arith.select %11, %20, %21 : vector<2x8x16xi1>, vector<2x8x16xf32>
    %cst_15 = arith.constant dense<0.000000e+00> : vector<2x16xf32>
    %23 = vector.multi_reduction <add>, %22, %cst_15 [1] : vector<2x8x16xf32> to vector<2x16xf32>
    %24 = vector.shape_cast %23 : vector<2x16xf32> to vector<2x1x16xf32>
    %cst_16 = arith.constant dense<0.000000e+00> : vector<2x8xf32>
    %25 = vector.multi_reduction <add>, %22, %cst_16 [2] : vector<2x8x16xf32> to vector<2x8xf32>
    %26 = vector.shape_cast %25 : vector<2x8xf32> to vector<2x8x1xf32>
    %27 = arith.sitofp %2 : vector<2x1x1xi32> to vector<2x1x1xf32>
    %28 = arith.sitofp %3 : vector<2x1x1xi32> to vector<2x1x1xf32>
    %29 = vector.broadcast %17 : vector<2x1x1xf32> to vector<2x8x1xf32>
    %30 = arith.subf %15, %29 : vector<2x8x1xf32>
    %31 = math.exp %30 : vector<2x8x1xf32>
    %cst_17 = arith.constant 9.99999996E-13 : f32
    %32 = vector.broadcast %cst_17 : f32 to vector<2x8x1xf32>
    %33 = arith.mulf %32, %31 : vector<2x8x1xf32>
    %34 = arith.addf %26, %33 : vector<2x8x1xf32>
    %35 = vector.broadcast %27 : vector<2x1x1xf32> to vector<2x8x1xf32>
    %36 = arith.mulf %34, %35 : vector<2x8x1xf32>
    %cst_18 = arith.constant 1.000000e+00 : f32
    %37 = vector.broadcast %cst_18 : f32 to vector<2x8x1xf32>
    %38 = arith.divf %37, %36 : vector<2x8x1xf32>
    %39 = vector.broadcast %17 : vector<2x1x1xf32> to vector<2x1x16xf32>
    %40 = arith.subf %13, %39 : vector<2x1x16xf32>
    %41 = math.exp %40 : vector<2x1x16xf32>
    %cst_19 = arith.constant 9.99999996E-13 : f32
    %42 = vector.broadcast %cst_19 : f32 to vector<2x1x16xf32>
    %43 = arith.mulf %42, %41 : vector<2x1x16xf32>
    %44 = arith.addf %24, %43 : vector<2x1x16xf32>
    %45 = vector.broadcast %28 : vector<2x1x1xf32> to vector<2x1x16xf32>
    %46 = arith.mulf %44, %45 : vector<2x1x16xf32>
    %cst_20 = arith.constant 1.000000e+00 : f32
    %47 = vector.broadcast %cst_20 : f32 to vector<2x1x16xf32>
    %48 = arith.divf %47, %46 : vector<2x1x16xf32>
    %49 = vector.broadcast %38 : vector<2x8x1xf32> to vector<2x8x16xf32>
    %50 = arith.mulf %22, %49 : vector<2x8x16xf32>
    %cst_21 = arith.constant dense<0.000000e+00> : vector<2x16xf32>
    %51 = vector.multi_reduction <add>, %50, %cst_21 [1] : vector<2x8x16xf32> to vector<2x16xf32>
    %52 = vector.shape_cast %51 : vector<2x16xf32> to vector<2x1x16xf32>
    %c0_22 = arith.constant 0 : index
    %c0_23 = arith.constant 0 : index
    %c0_24 = arith.constant 0 : index
    %53 = vector.load %arg5[%c0_22, %c0_23, %c0_24] : memref<2x1x16xf32, #tpu.memory_space<vmem>>, vector<2x1x16xf32>
    tpu.vector_store %arg5[%c0_22, %c0_23, %c0_24], %52 {strides = array<i32>} : memref<2x1x16xf32, #tpu.memory_space<vmem>>, vector<2x1x16xf32>,
    %54 = vector.broadcast %48 : vector<2x1x16xf32> to vector<2x8x16xf32>
    %55 = arith.mulf %22, %54 : vector<2x8x16xf32>
    %cst_25 = arith.constant dense<0.000000e+00> : vector<2x8xf32>
    %56 = vector.multi_reduction <add>, %55, %cst_25 [2] : vector<2x8x16xf32> to vector<2x8xf32>
    %57 = vector.shape_cast %56 : vector<2x8xf32> to vector<2x8x1xf32>
    %c0_26 = arith.constant 0 : index
    %c0_27 = arith.constant 0 : index
    %c0_28 = arith.constant 0 : index
    %58 = vector.load %arg6[%c0_26, %c0_27, %c0_28] : memref<2x8x1xf32, #tpu.memory_space<vmem>>, vector<2x8x1xf32>
    tpu.vector_store %arg6[%c0_26, %c0_27, %c0_28], %57 {strides = array<i32>} : memref<2x8x1xf32, #tpu.memory_space<vmem>>, vector<2x8x1xf32>,
    return
  }
  func.func @transform_0(%arg0: i32) -> (i32, i32, i32) {
    %c0_i32 = arith.constant 0 : i32
    %c0_i32_0 = arith.constant 0 : i32
    %c0_i32_1 = arith.constant 0 : i32
    return %arg0, %c0_i32, %c0_i32_0 : i32, i32, i32
  }
  func.func @transform_1(%arg0: i32) -> (i32, i32, i32) {
    %c0_i32 = arith.constant 0 : i32
    %c0_i32_0 = arith.constant 0 : i32
    %c0_i32_1 = arith.constant 0 : i32
    return %arg0, %c0_i32, %c0_i32_0 : i32, i32, i32
  }
  func.func @transform_2(%arg0: i32) -> (i32, i32, i32) {
    %c0_i32 = arith.constant 0 : i32
    %c0_i32_0 = arith.constant 0 : i32
    %c0_i32_1 = arith.constant 0 : i32
    return %arg0, %c0_i32, %c0_i32_0 : i32, i32, i32
  }
  func.func @transform_3(%arg0: i32) -> (i32, i32, i32) {
    %c0_i32 = arith.constant 0 : i32
    %c0_i32_0 = arith.constant 0 : i32
    %c0_i32_1 = arith.constant 0 : i32
    return %arg0, %c0_i32, %c0_i32_0 : i32, i32, i32
  }
  func.func @transform_4(%arg0: i32) -> (i32, i32, i32) {
    %c0_i32 = arith.constant 0 : i32
    %c0_i32_0 = arith.constant 0 : i32
    %c0_i32_1 = arith.constant 0 : i32
    return %arg0, %c0_i32, %c0_i32_0 : i32, i32, i32
  }
  func.func @transform_5(%arg0: i32) -> (i32, i32, i32) {
    %c0_i32 = arith.constant 0 : i32
    %c0_i32_0 = arith.constant 0 : i32
    %c0_i32_1 = arith.constant 0 : i32
    return %arg0, %c0_i32, %c0_i32_0 : i32, i32, i32
  }
}

</mosaic_0001>

<llo_original>
// kernel: tpu_custom_call.1
$region0: #{tpu_custom_call.1}
  #allocation0 [shape = 'u32[]', space=smem, size = 0x4, offset = 0x4, fixed_abs, tag = 'smem constant byte address 0x4 - core index']
  #allocation1 [shape = 'u32[72,128]{1,0:T(1,128)}', space=vmem, size = 0x9000, scoped, tag = 'internal scratch']
  %s0 = inlined_call_operand.vmem [shape: s32[2,1,1], index: 0, kind: input, shape index: {}]
  %s1 = inlined_call_operand.vmem [shape: s32[2,1,1], index: 1, kind: input, shape index: {}]
  %s2 = inlined_call_operand.hbm [shape: f32[2,8,32], index: 2, kind: input, shape index: {}]
  %s3 = inlined_call_operand.hbm [shape: f32[2,16,32], index: 3, kind: input, shape index: {}]
  %s4 = inlined_call_operand.hbm [shape: f32[2,1,16], index: 4, kind: output, shape index: {0}]
  %s5 = inlined_call_operand.vmem [shape: f32[2,8,1], index: 5, kind: output, shape index: {1}]
  %6 = xla_tuple %s4, %s5
  %s7 = sld [smem:[#allocation0]]
  $region42: #{tpu_custom_call.1} parent=0
    _
  %s9 = ssub.s32 1, %s7
  %s10 = scalar_select 0, %s9, %s7
  $region1: #{tpu_custom_call.1} parent=0
    #allocation2 [shape = 'u8[8192]{0}', space=vmem, size = 0x2000, scoped, tag = 'input window, operand 2, single buffered']
    #allocation3 [shape = 's32[1]{0}', space=sflag, size = 0x4, scoped, tag = 'scoped memory for tpu_custom_call.1']
    #allocation4 [shape = 's32[1]{0}', space=sflag, size = 0x4, scoped, tag = 'scoped memory for tpu_custom_call.1']
    #allocation5 [shape = 'u8[16384]{0}', space=vmem, size = 0x4000, scoped, tag = 'input window, operand 3, single buffered']
    #allocation6 [shape = 's32[1]{0}', space=sflag, size = 0x4, scoped, tag = 'scoped memory for tpu_custom_call.1']
    #allocation7 [shape = 'u8[1024]{0}', space=vmem, size = 0x400, scoped, tag = 'output window, operand 0, single buffered']
    %11 = vsyncpa [#allocation3], 0
    %12 = vsyncpa [#allocation6], 0
    %13 = vsyncpa [#allocation4], 0
    // Predicated region
    $region2: #{tpu_custom_call.1} parent=1 // pred_check
      _
    $region3: #{tpu_custom_call.1} parent=1 // pred_check_branch
      %15 = sbr.rel (0) target = $region5
    $region4: #{tpu_custom_call.1} parent=1 // pred_region
      _
    $region5: #{tpu_custom_call.1} parent=1 // pred_fallthru
      _
    // Predicated region
    $region6: #{tpu_custom_call.1} parent=1 // pred_check
      _
    $region7: #{tpu_custom_call.1} parent=1 // pred_check_branch
      %17 = sbr.rel (0) target = $region9
    $region8: #{tpu_custom_call.1} parent=1 // pred_region
      _
    $region9: #{tpu_custom_call.1} parent=1 // pred_fallthru
      _
    // Predicated region
    $region10: #{tpu_custom_call.1} parent=1 // pred_check
      _
    $region11: #{tpu_custom_call.1} parent=1 // pred_check_branch
      %19 = sbr.rel (0) target = $region13
    $region12: #{tpu_custom_call.1} parent=1 // pred_region
      %21 = vsyncadd [#allocation3], 0
      %s22 = sshll.u32 %s2, 4
      %s23 = int_to_ptr.hbm [resolvable:$true] %s22
      %s24 = sshll.u32 [#allocation2], 4
      %s25 = int_to_ptr.vmem [resolvable:$true] %s24
      %30 = dma.hbm_to_vmem [thread:$0]  %s23, 256, %s25, [#allocation3], 128, 128, 8
    $region13: #{tpu_custom_call.1} parent=1 // pred_fallthru
      _
    // Predicated region
    $region14: #{tpu_custom_call.1} parent=1 // pred_check
      _
    $region15: #{tpu_custom_call.1} parent=1 // pred_check_branch
      %32 = sbr.rel (0) target = $region17
    $region16: #{tpu_custom_call.1} parent=1 // pred_region
      %34 = vsyncadd [#allocation6], 0
      %s35 = sshll.u32 %s3, 4
      %s36 = int_to_ptr.hbm [resolvable:$true] %s35
      %s37 = sshll.u32 [#allocation5], 4
      %s38 = int_to_ptr.vmem [resolvable:$true] %s37
      %43 = dma.hbm_to_vmem [thread:$0]  %s36, 512, %s38, [#allocation6], 128, 128, 8
    $region17: #{tpu_custom_call.1} parent=1 // pred_fallthru
      _
    // Predicated region
    $region18: #{tpu_custom_call.1} parent=1 // pred_check
      _
    $region19: #{tpu_custom_call.1} parent=1 // pred_check_branch
      %45 = sbr.rel (0) target = $region21
    $region20: #{tpu_custom_call.1} parent=1 // pred_region
      %47 = dma.done [#allocation3], 256
    $region21: #{tpu_custom_call.1} parent=1 // pred_fallthru
      _
    // Predicated region
    $region22: #{tpu_custom_call.1} parent=1 // pred_check
      _
    $region23: #{tpu_custom_call.1} parent=1 // pred_check_branch
      %49 = sbr.rel (0) target = $region25
    $region24: #{tpu_custom_call.1} parent=1 // pred_region
      %51 = dma.done [#allocation6], 512
    $region25: #{tpu_custom_call.1} parent=1 // pred_fallthru
      _
    %v52 = vld [vmem:[#allocation2] sm:$0xff]
    %v53 = vld [vmem:[#allocation2 + $0x8] sm:$0xff]
    %v54 = vld [vmem:[#allocation5] sm:$0xff]
    %v55 = vld [vmem:[#allocation5 + $0x8] sm:$0xff]
    %v56 = vld [vmem:[#allocation5 + $0x10] sm:$0xff]
    %v57 = vld [vmem:[#allocation5 + $0x18] sm:$0xff]
    %v58 = vld [vmem:[%s0] sm:$0x1]
    %v59 = vld [vmem:[%s0 + $0x1] sm:$0x1]
    %v60 = vld [vmem:[%s1] sm:$0x1]
    %v61 = vld [vmem:[%s1 + $0x1] sm:$0x1]
    %vm62 = vcmask 261120
    %v64 = vsel %vm62, %v52, 0
    %v67 = vsel %vm62, %v54, 0
    %v70 = vsel %vm62, %v55, 0
    %72 = vmatpush.xpose.msra.mxu0 0.0
    %73 = vmatpush.xpose.msra.mxu0 0.0
    %74 = vmatpush.xpose.msra.mxu0 0.0
    %75 = vmatpush.xpose.msra.mxu0 0.0
    %76 = vmatpush.xpose.msra.mxu0 0.0
    %77 = vmatpush.xpose.msra.mxu0 0.0
    %78 = vmatpush.xpose.msra.mxu0 0.0
    %79 = vmatpush.xpose.msra.mxu0 0.0
    %80 = vmatpush.xpose.msra.mxu0 0.0
    %81 = vmatpush.xpose.msra.mxu0 0.0
    %82 = vmatpush.xpose.msra.mxu0 0.0
    %83 = vmatpush.xpose.msra.mxu0 0.0
    %84 = vmatpush.xpose.msra.mxu0 0.0
    %85 = vmatpush.xpose.msra.mxu0 0.0
    %86 = vmatpush.xpose.msra.mxu0 %v70
    %87 = vmatpush.xpose.msra.mxu0 %v67
    %88 = vmatmul.f32.gmra.mxu0 %v64
    %v89 = vpop.f32.mrf.mxu0
    %v90 = vadd.f32 0.0, %v89
    %91 = vdwg.mxu0
    %v93 = vsel %vm62, %v53, 0
    %v96 = vsel %vm62, %v56, 0
    %v99 = vsel %vm62, %v57, 0
    %101 = vmatpush.xpose.msra.mxu0 0.0
    %102 = vmatpush.xpose.msra.mxu0 0.0
    %103 = vmatpush.xpose.msra.mxu0 0.0
    %104 = vmatpush.xpose.msra.mxu0 0.0
    %105 = vmatpush.xpose.msra.mxu0 0.0
    %106 = vmatpush.xpose.msra.mxu0 0.0
    %107 = vmatpush.xpose.msra.mxu0 0.0
    %108 = vmatpush.xpose.msra.mxu0 0.0
    %109 = vmatpush.xpose.msra.mxu0 0.0
    %110 = vmatpush.xpose.msra.mxu0 0.0
    %111 = vmatpush.xpose.msra.mxu0 0.0
    %112 = vmatpush.xpose.msra.mxu0 0.0
    %113 = vmatpush.xpose.msra.mxu0 0.0
    %114 = vmatpush.xpose.msra.mxu0 0.0
    %115 = vmatpush.xpose.msra.mxu0 %v99
    %116 = vmatpush.xpose.msra.mxu0 %v96
    %117 = vmatmul.f32.gmra.mxu0 %v93
    %v118 = vpop.f32.mrf.mxu0
    %v119 = vadd.f32 0.0, %v118
    %120 = vdwg.mxu0
    %v121 = vlaneseq
    %v122 = vshrl.u32 %v121, 7
    %v123 = vperm.slane %v58, 0
    %v124 = vperm.slane %v59, 0
    %125 = vset.pattern.permute.xlu0 0
    %126 = vperm.xlu0 %125, %v123
    %v127 = vpop.permute.xlu0 %126
    %128 = vset.pattern.permute.xlu0 0
    %129 = vperm.xlu0 %128, %v124
    %v130 = vpop.permute.xlu0 %129
    %vm131 = vcmp.lt.s32.totalorder %v122, %v127
    %vm132 = vcmp.lt.s32.totalorder %v122, %v130
    %v133 = vlaneseq
    %v134 = vand.u32 %v133, 127
    %v135 = vperm.slane %v60, 0
    %v136 = vperm.slane %v61, 0
    %137 = vset.pattern.permute.xlu0 0
    %138 = vperm.xlu0 %137, %v135
    %v139 = vpop.permute.xlu0 %138
    %140 = vset.pattern.permute.xlu0 0
    %141 = vperm.xlu0 %140, %v136
    %v142 = vpop.permute.xlu0 %141
    %vm143 = vcmp.lt.s32.totalorder %v134, %v139
    %vm144 = vcmp.lt.s32.totalorder %v134, %v142
    %vm145 = vmand %vm131, %vm143
    %vm146 = vmand %vm132, %vm144
    %vm147 = vcmask 130048
    %v148 = vsel %vm147, %v90, -inf
    %v149 = vrot.slane %v148, 4
    %v150 = vmax.f32 %v148, %v149
    %v151 = vrot.slane %v150, 2
    %v152 = vmax.f32 %v150, %v151
    %v153 = vrot.slane %v152, 1
    %v154 = vmax.f32 %v152, %v153
    %v155 = vsel %vm147, %v119, -inf
    %v156 = vrot.slane %v155, 4
    %v157 = vmax.f32 %v155, %v156
    %v158 = vrot.slane %v157, 2
    %v159 = vmax.f32 %v157, %v158
    %v160 = vrot.slane %v159, 1
    %v161 = vmax.f32 %v159, %v160
    %162 = vmax.xlane.f32.xlu0 %v148
    %v163 = vpop.xlane.xlu0 %162
    %164 = vmax.xlane.f32.xlu0 %v155
    %v165 = vpop.xlane.xlu0 %164
    %v166 = vrot.slane %v163, 4
    %v167 = vmax.f32 %v163, %v166
    %v168 = vrot.slane %v167, 2
    %v169 = vmax.f32 %v167, %v168
    %v170 = vrot.slane %v169, 1
    %v171 = vmax.f32 %v169, %v170
    %v172 = vrot.slane %v165, 4
    %v173 = vmax.f32 %v165, %v172
    %v174 = vrot.slane %v173, 2
    %v175 = vmax.f32 %v173, %v174
    %v176 = vrot.slane %v175, 1
    %v177 = vmax.f32 %v175, %v176
    %v178 = vsub.f32 %v90, %v171
    %v179 = vsub.f32 %v119, %v177
    %v180 = vmul.f32 %v178, 1.442695
    %v181 = vpow.pop %v180
    %v182 = vmul.f32 %v179, 1.442695
    %v183 = vpow.pop %v182
    %v184 = vsel %vm145, %v181, 0.0
    %v185 = vsel %vm146, %v183, 0.0
    %v186 = vsel %vm147, %v184, 0.0
    %v187 = vrot.slane %v186, 4
    %v188 = vadd.f32 %v186, %v187
    %v189 = vrot.slane %v188, 2
    %v190 = vadd.f32 %v188, %v189
    %v191 = vrot.slane %v190, 1
    %v192 = vadd.f32 %v190, %v191
    %v193 = vsel %vm147, %v185, 0.0
    %v194 = vrot.slane %v193, 4
    %v195 = vadd.f32 %v193, %v194
    %v196 = vrot.slane %v195, 2
    %v197 = vadd.f32 %v195, %v196
    %v198 = vrot.slane %v197, 1
    %v199 = vadd.f32 %v197, %v198
    %200 = vadd.xlane.f32.xlu0 %v186
    %v201 = vpop.xlane.xlu0 %200
    %202 = vadd.xlane.f32.xlu0 %v193
    %v203 = vpop.xlane.xlu0 %202
    %v204 = vcvt.s32.f32 %v58
    %v205 = vcvt.s32.f32 %v59
    %v206 = vcvt.s32.f32 %v60
    %v207 = vcvt.s32.f32 %v61
    %v208 = vsub.f32 %v163, %v171
    %v209 = vsub.f32 %v165, %v177
    %v210 = vmul.f32 %v208, 1.442695
    %v211 = vpow.pop %v210
    %v212 = vmul.f32 %v209, 1.442695
    %v213 = vpow.pop %v212
    %v214 = vmul.f32 %v211, 1e-12
    %v215 = vmul.f32 %v213, 1e-12
    %v216 = vadd.f32 %v201, %v214
    %v217 = vadd.f32 %v203, %v215
    %v220 = vperm.slane %v204, 0
    %v221 = vperm.slane %v205, 0
    %v224 = vmul.f32 %v216, %v220
    %v225 = vmul.f32 %v217, %v221
    %v226 = vrcp.pop %v224
    %v227 = vmul.f32 %v224, %v226
    %v228 = vsub.f32 1.0, %v227
    %v229 = vmul.f32 %v226, %v228
    %v230 = vadd.f32 %v226, %v229
    %vm231 = vweird.f32 %v224
    %vm232 = vweird.f32 %v226
    %vm233 = vmor %vm231, %vm232
    %v234 = vsel %vm233, %v226, %v230
    %v235 = vand.u32 2147483647, %v224
    %vm236 = vcmp.eq.f32.partialorder %v235, 8.507059e+37
    %v237 = vand.u32 %v224, 2147483648
    %v238 = vor.u32 1.1754944e-38, %v237
    %v239 = vsel %vm236, %v238, %v234
    %v240 = vmul.f32 1.0, %v239
    %v241 = vrcp.pop %v225
    %v242 = vmul.f32 %v225, %v241
    %v243 = vsub.f32 1.0, %v242
    %v244 = vmul.f32 %v241, %v243
    %v245 = vadd.f32 %v241, %v244
    %vm246 = vweird.f32 %v225
    %vm247 = vweird.f32 %v241
    %vm248 = vmor %vm246, %vm247
    %v249 = vsel %vm248, %v241, %v245
    %v250 = vand.u32 2147483647, %v225
    %vm251 = vcmp.eq.f32.partialorder %v250, 8.507059e+37
    %v252 = vand.u32 %v225, 2147483648
    %v253 = vor.u32 1.1754944e-38, %v252
    %v254 = vsel %vm251, %v253, %v249
    %v255 = vmul.f32 1.0, %v254
    %v256 = vsub.f32 %v154, %v171
    %v257 = vsub.f32 %v161, %v177
    %v258 = vmul.f32 %v256, 1.442695
    %v259 = vpow.pop %v258
    %v260 = vmul.f32 %v257, 1.442695
    %v261 = vpow.pop %v260
    %v262 = vmul.f32 %v259, 1e-12
    %v263 = vmul.f32 %v261, 1e-12
    %v264 = vadd.f32 %v192, %v262
    %v265 = vadd.f32 %v199, %v263
    %267 = vset.pattern.permute.xlu0 0
    %268 = vperm.xlu0 %267, %v206
    %v269 = vpop.permute.xlu0 %268
    %v271 = vperm.slane %v269, 0
    %273 = vset.pattern.permute.xlu0 0
    %274 = vperm.xlu0 %273, %v207
    %v275 = vpop.permute.xlu0 %274
    %v277 = vperm.slane %v275, 0
    %v278 = vmul.f32 %v264, %v271
    %v279 = vmul.f32 %v265, %v277
    %v280 = vrcp.pop %v278
    %v281 = vmul.f32 %v278, %v280
    %v282 = vsub.f32 1.0, %v281
    %v283 = vmul.f32 %v280, %v282
    %v284 = vadd.f32 %v280, %v283
    %vm285 = vweird.f32 %v278
    %vm286 = vweird.f32 %v280
    %vm287 = vmor %vm285, %vm286
    %v288 = vsel %vm287, %v280, %v284
    %v289 = vand.u32 2147483647, %v278
    %vm290 = vcmp.eq.f32.partialorder %v289, 8.507059e+37
    %v291 = vand.u32 %v278, 2147483648
    %v292 = vor.u32 1.1754944e-38, %v291
    %v293 = vsel %vm290, %v292, %v288
    %v294 = vmul.f32 1.0, %v293
    %v295 = vrcp.pop %v279
    %v296 = vmul.f32 %v279, %v295
    %v297 = vsub.f32 1.0, %v296
    %v298 = vmul.f32 %v295, %v297
    %v299 = vadd.f32 %v295, %v298
    %vm300 = vweird.f32 %v279
    %vm301 = vweird.f32 %v295
    %vm302 = vmor %vm300, %vm301
    %v303 = vsel %vm302, %v295, %v299
    %v304 = vand.u32 2147483647, %v279
    %vm305 = vcmp.eq.f32.partialorder %v304, 8.507059e+37
    %v306 = vand.u32 %v279, 2147483648
    %v307 = vor.u32 1.1754944e-38, %v306
    %v308 = vsel %vm305, %v307, %v303
    %v309 = vmul.f32 1.0, %v308
    %311 = vset.pattern.permute.xlu0 0
    %312 = vperm.xlu0 %311, %v240
    %v313 = vpop.permute.xlu0 %312
    %316 = vset.pattern.permute.xlu0 0
    %317 = vperm.xlu0 %316, %v255
    %v318 = vpop.permute.xlu0 %317
    %v320 = vmul.f32 %v184, %v313
    %v321 = vmul.f32 %v185, %v318
    %v322 = vsel %vm147, %v320, 0.0
    %v323 = vrot.slane %v322, 4
    %v324 = vadd.f32 %v322, %v323
    %v325 = vrot.slane %v324, 2
    %v326 = vadd.f32 %v324, %v325
    %v327 = vrot.slane %v326, 1
    %v328 = vadd.f32 %v326, %v327
    %v329 = vsel %vm147, %v321, 0.0
    %v330 = vrot.slane %v329, 4
    %v331 = vadd.f32 %v329, %v330
    %v332 = vrot.slane %v331, 2
    %v333 = vadd.f32 %v331, %v332
    %v334 = vrot.slane %v333, 1
    %v335 = vadd.f32 %v333, %v334
    %vm336 = vcmask 122880
    %337 = vst.msk [vmem:[#allocation7] sm:$0x1] %vm336, %v328
    %338 = vst.msk [vmem:[#allocation7 + $0x1] sm:$0x1] %vm336, %v335
    %v339 = vmul.f32 %v184, %v294
    %v340 = vmul.f32 %v185, %v309
    %v341 = vsel %vm147, %v339, 0.0
    %342 = vadd.xlane.f32.xlu0 %v341
    %v343 = vpop.xlane.xlu0 %342
    %v344 = vsel %vm147, %v340, 0.0
    %345 = vadd.xlane.f32.xlu0 %v344
    %v346 = vpop.xlane.xlu0 %345
    %vm347 = vcmask 7168
    %348 = vst.msk [vmem:[%s5] sm:$0xff] %vm347, %v343
    %349 = vst.msk [vmem:[%s5 + $0x8] sm:$0xff] %vm347, %v346
    // Predicated region
    $region26: #{tpu_custom_call.1} parent=1 // pred_check
      _
    $region27: #{tpu_custom_call.1} parent=1 // pred_check_branch
      %351 = sbr.rel (0) target = $region29
    $region28: #{tpu_custom_call.1} parent=1 // pred_region
      %353 = vsyncadd [#allocation4], 0
      %s354 = sshll.u32 [#allocation7], 4
      %s355 = int_to_ptr.vmem [resolvable:$true] %s354
      %s356 = sshll.u32 %s4, 4
      %s357 = int_to_ptr.hbm [resolvable:$true] %s356
      %362 = dma.vmem_to_hbm [thread:$0]  %s355, 32, %s357, [#allocation4], 16, 16, 1
    $region29: #{tpu_custom_call.1} parent=1 // pred_fallthru
      _
    // Predicated region
    $region30: #{tpu_custom_call.1} parent=1 // pred_check
      _
    $region31: #{tpu_custom_call.1} parent=1 // pred_check_branch
      %364 = sbr.rel (0) target = $region33
    $region32: #{tpu_custom_call.1} parent=1 // pred_region
      _
    $region33: #{tpu_custom_call.1} parent=1 // pred_fallthru
      _
    // Predicated region
    $region34: #{tpu_custom_call.1} parent=1 // pred_check
      _
    $region35: #{tpu_custom_call.1} parent=1 // pred_check_branch
      %366 = sbr.rel (0) target = $region37
    $region36: #{tpu_custom_call.1} parent=1 // pred_region
      %368 = dma.done [#allocation4], 32
    $region37: #{tpu_custom_call.1} parent=1 // pred_fallthru
      _
    // Predicated region
    $region38: #{tpu_custom_call.1} parent=1 // pred_check
      _
    $region39: #{tpu_custom_call.1} parent=1 // pred_check_branch
      %370 = sbr.rel (0) target = $region41
    $region40: #{tpu_custom_call.1} parent=1 // pred_region
      _
    $region41: #{tpu_custom_call.1} parent=1 // pred_fallthru
      _
    %371 = vsyncpa [#allocation3], 1
    %372 = vsyncpa [#allocation6], 1
    %373 = vsyncpa [#allocation4], 1

</llo_original>
